<compile_context>
chip_gen: v6e
topology: v6e:2x2x1
jax: 0.10.0
libtpu: 0.0.40
codegen_flags: <defaults>
</compile_context>

<pallas_src>
import math

import jax
import jax.numpy as jnp
from jax.experimental import pallas as pl
from jax.experimental.pallas import tpu as pltpu

_LN10 = 2.302585092994045684  # ln(10)


def _exp10_kernel(x_ref, o_ref):
    # Elementwise exp(x * ln(10)), computed in f32 regardless of I/O dtype.
    xf = x_ref[...].astype(jnp.float32)
    o_ref[...] = jnp.exp(xf * jnp.float32(_LN10)).astype(o_ref.dtype)


def _vmem_capacity_bytes():
    """Per-TensorCore VMEM capacity; never silently default to the small value."""
    try:
        info = pltpu.get_tpu_info()
        v = getattr(info, "vmem_capacity_bytes", None)
        if v:
            return int(v)
    except Exception:
        pass
    try:
        kind = jax.devices()[0].device_kind.lower()
        if "v7" in kind:
            return 64 << 20  # v7x: 64 MiB per TC
    except Exception:
        pass
    return 128 << 20  # v5e / v6e


def _exp10_pallas_2d(flat, out_dtype):
    """Pallas path for a 1-D array whose length is a multiple of 128."""
    n = int(flat.shape[0])
    itemsize = flat.dtype.itemsize
    pack = max(1, 4 // itemsize)   # sublane packing: f32=1, bf16=2, 8-bit=4
    sub_mult = 8 * pack            # row-block multiple for clean packed layout

    # Lane-dense width that divides n exactly (n is a multiple of 128).
    W = 128
    for cand in (4096, 2048, 1024, 512, 384, 256, 128):
        if n % cand == 0:
            W = cand
            break
    R = n // W
    x2 = flat.reshape(R, W)

    vmem_bytes = _vmem_capacity_bytes()
    # ~vmem/8 per block: 8 MiB on v7x, 16 MiB on 128-MiB-VMEM chips.
    target_bytes = min(16 << 20, max(4 << 20, vmem_bytes // 8))
    bytes_per_row = W * itemsize

    tr = max(1, target_bytes // bytes_per_row)
    tr = max(sub_mult, (tr // sub_mult) * sub_mult)

    if tr >= R:
        if R >= 2 * sub_mult:
            # Whole array fits one block: still split into two near-even steps
            # so the "parallel" axis can shard across v7x's two TensorCores.
            tr = sub_mult * pl.cdiv(pl.cdiv(R, 2), sub_mult)
        else:
            tr = R  # full first dim: always a legal block shape
    else:
        # Snap tr to a divisor of R near the target so every block is full
        # (unmasked stores); prefer an even step count for a balanced split.
        steps0 = pl.cdiv(R, tr)
        best = None
        for s in range(steps0, steps0 + 9):
            if R % s == 0 and (R // s) % sub_mult == 0:
                if best is None:
                    best = s
                if s % 2 == 0:
                    best = s
                    break
        if best is not None:
            tr = R // best

    grid = (pl.cdiv(R, tr),)
    block_bytes = tr * bytes_per_row
    # in + out, double-buffered => ~4 live block copies; add headroom but stay
    # well under the physical per-core VMEM.
    vmem_limit = min(4 * block_bytes + (8 << 20), vmem_bytes - (16 << 20))
    vmem_limit = int(max(vmem_limit, 32 << 20))

    out = pl.pallas_call(
        _exp10_kernel,
        out_shape=jax.ShapeDtypeStruct((R, W), out_dtype),
        grid_spec=pltpu.PrefetchScalarGridSpec(
            num_scalar_prefetch=0,
            grid=grid,
            in_specs=[pl.BlockSpec((tr, W), lambda i: (i, 0))],
            out_specs=pl.BlockSpec((tr, W), lambda i: (i, 0)),
        ),
        compiler_params=pltpu.CompilerParams(
            dimension_semantics=("parallel",),
            vmem_limit_bytes=vmem_limit,
        ),
        cost_estimate=pl.CostEstimate(
            flops=n,
            transcendentals=n,
            bytes_accessed=n * itemsize + n * jnp.dtype(out_dtype).itemsize,
        ),
    )(x2)
    return out.reshape(-1)


def exponential_layer(x):
    """Computes exp(x * ln(10)) elementwise, matching the torch module."""
    orig_shape = x.shape
    if not jnp.issubdtype(x.dtype, jnp.floating):
        # torch promotes via the float multiply before exp -> float32 output.
        x = x.astype(jnp.float32)
    out_dtype = x.dtype

    n = int(math.prod(orig_shape))
    if n == 0:
        return jnp.reshape(x, orig_shape)

    flat = jnp.reshape(x, (-1,))
    prefix = (n // 128) * 128

    if prefix == 0:
        # Tiny (< 128 elements): not worth a kernel launch.
        y = jnp.exp(flat.astype(jnp.float32) * jnp.float32(_LN10)).astype(out_dtype)
        return y.reshape(orig_shape)

    if prefix == n:
        out_flat = _exp10_pallas_2d(flat, out_dtype)
    else:
        # Ragged tail (< 128 elems): fast Pallas path on the divisible prefix,
        # plain jnp.exp on the tail, then stitch. Avoids padding + slicing the
        # whole array through HBM.
        head_out = _exp10_pallas_2d(flat[:prefix], out_dtype)
        tail = flat[prefix:].astype(jnp.float32)
        tail_out = jnp.exp(tail * jnp.float32(_LN10)).astype(out_dtype)
        out_flat = jnp.concatenate([head_out, tail_out])

    return out_flat.reshape(orig_shape)


if __name__ == "__main__":
    ln10 = jnp.log(jnp.float32(10.0))

    # Small NCHW-like input consistent with an elementwise module.
    x = jax.random.normal(jax.random.PRNGKey(0), (2, 4, 16, 16), dtype=jnp.float32)
    y = jax.block_until_ready(exponential_layer(x))
    y_ref = jnp.exp(x * ln10)
    assert y.shape == x.shape and y.dtype == x.dtype
    assert jnp.allclose(y, y_ref, rtol=1e-6, atol=1e-6)

    # R not divisible by the row block (17 rows of 128) -> masked boundary block.
    x2 = jax.random.normal(jax.random.PRNGKey(1), (17, 128), dtype=jnp.float32)
    y2 = jax.block_until_ready(exponential_layer(x2))
    assert y2.shape == x2.shape and y2.dtype == x2.dtype
    assert jnp.allclose(y2, jnp.exp(x2 * ln10), rtol=1e-6, atol=1e-6)

    # Ragged total size (> 128, not a multiple of 128) -> prefix + tail stitch.
    x3 = jax.random.normal(jax.random.PRNGKey(2), (7, 33), dtype=jnp.float32)
    y3 = jax.block_until_ready(exponential_layer(x3))
    assert y3.shape == x3.shape and y3.dtype == x3.dtype
    assert jnp.allclose(y3, jnp.exp(x3 * ln10), rtol=1e-6, atol=1e-6)

    # Tiny ragged (< 128 elements) -> pure jnp fallback path.
    x4 = jax.random.normal(jax.random.PRNGKey(3), (3, 5, 7), dtype=jnp.float32)
    y4 = jax.block_until_ready(exponential_layer(x4))
    assert y4.shape == x4.shape and y4.dtype == x4.dtype
    assert jnp.allclose(y4, jnp.exp(x4 * ln10), rtol=1e-6, atol=1e-6)

    # bf16 I/O (compute stays f32 in-kernel).
    x5 = jax.random.normal(jax.random.PRNGKey(4), (4, 8, 64), dtype=jnp.bfloat16)
    y5 = jax.block_until_ready(exponential_layer(x5))
    ref5 = jnp.exp(x5.astype(jnp.float32) * ln10).astype(jnp.bfloat16)
    assert y5.shape == x5.shape and y5.dtype == x5.dtype
    assert jnp.allclose(y5.astype(jnp.float32), ref5.astype(jnp.float32),
                        rtol=2e-2, atol=2e-2)

    print("KERNEL_OK")
</pallas_src>

<mosaic_0001>
module attributes {stable_mosaic.version = 11 : i64} {
  func.func @_exp10_kernel(%arg0: i32, %arg1: memref<1x2048xf32, #tpu.memory_space<vmem>>, %arg2: memref<1x2048xf32, #tpu.memory_space<vmem>>) attributes {dimension_semantics = [#tpu.dimension_semantics<parallel>], iteration_bounds = array<i64: 1>, scalar_prefetch = 0 : i64, scratch_operands = 0 : i64, tpu.core_type = #tpu.core_type<tc>, window_params = [{transform_indices = @transform_0, window_bounds = array<i64: 1, 2048>}, {transform_indices = @transform_1, window_bounds = array<i64: 1, 2048>}]} {
    %c0 = arith.constant 0 : index
    %c0_0 = arith.constant 0 : index
    %0 = vector.load %arg1[%c0, %c0_0] : memref<1x2048xf32, #tpu.memory_space<vmem>>, vector<1x2048xf32>
    %cst = arith.constant 2.30258512 : f32
    %1 = vector.broadcast %cst : f32 to vector<1x2048xf32>
    %2 = arith.mulf %0, %1 : vector<1x2048xf32>
    %3 = math.exp %2 : vector<1x2048xf32>
    %c0_1 = arith.constant 0 : index
    %c0_2 = arith.constant 0 : index
    %4 = vector.load %arg2[%c0_1, %c0_2] : memref<1x2048xf32, #tpu.memory_space<vmem>>, vector<1x2048xf32>
    tpu.vector_store %arg2[%c0_1, %c0_2], %3 {strides = array<i32>} : memref<1x2048xf32, #tpu.memory_space<vmem>>, vector<1x2048xf32>,
    return
  }
  func.func @transform_0(%arg0: i32) -> (i32, i32) {
    %c0_i32 = arith.constant 0 : i32
    %c0_i32_0 = arith.constant 0 : i32
    return %arg0, %c0_i32 : i32, i32
  }
  func.func @transform_1(%arg0: i32) -> (i32, i32) {
    %c0_i32 = arith.constant 0 : i32
    %c0_i32_0 = arith.constant 0 : i32
    return %arg0, %c0_i32 : i32, i32
  }
}

</mosaic_0001>

<llo_original>
// kernel: tpu_custom_call.1
$region0: #{tpu_custom_call.1}
  #allocation0 [shape = 'u32[]', space=smem, size = 0x4, offset = 0x4, fixed_abs, tag = 'smem constant byte address 0x4 - core index']
  #allocation1 [shape = 'u32[144,128]{1,0:T(1,128)}', space=vmem, size = 0x12000, scoped, tag = 'internal scratch']
  %s0 = inlined_call_operand.hbm [shape: f32[1,2048], index: 0, kind: input, shape index: {}]
  %s1 = inlined_call_operand.hbm [shape: f32[1,2048], index: 1, kind: output, shape index: {}]
  %s2 = sld [smem:[#allocation0]]
  $region18: #{tpu_custom_call.1} parent=0
    _
  %s4 = ssub.s32 1, %s2
  %s5 = scalar_select 0, %s4, %s2
  $region1: #{tpu_custom_call.1} parent=0
    #allocation2 [shape = 'u8[8192]{0}', space=vmem, size = 0x2000, scoped, tag = 'input window, operand 0, single buffered']
    #allocation3 [shape = 's32[1]{0}', space=sflag, size = 0x4, scoped, tag = 'scoped memory for tpu_custom_call.1']
    #allocation4 [shape = 's32[1]{0}', space=sflag, size = 0x4, scoped, tag = 'scoped memory for tpu_custom_call.1']
    #allocation5 [shape = 'u8[8192]{0}', space=vmem, size = 0x2000, scoped, tag = 'output window, operand 0, single buffered']
    %6 = vsyncpa [#allocation3], 0
    %7 = vsyncpa [#allocation4], 0
    // Predicated region
    $region2: #{tpu_custom_call.1} parent=1 // pred_check
      _
    $region3: #{tpu_custom_call.1} parent=1 // pred_check_branch
      %9 = sbr.rel (0) target = $region5
    $region4: #{tpu_custom_call.1} parent=1 // pred_region
      %s11 = ssub.s32 256, 256
      %12 = vsyncadd [#allocation3], %s11
      %s14 = sshll.u32 [#allocation2], 4
      %s15 = int_to_ptr.vmem [resolvable:$true] %s14
      %17 = dma.hbm_to_vmem [thread:$0]  %s0, 256, %s15, [#allocation3]
    $region5: #{tpu_custom_call.1} parent=1 // pred_fallthru
      _
    // Predicated region
    $region6: #{tpu_custom_call.1} parent=1 // pred_check
      _
    $region7: #{tpu_custom_call.1} parent=1 // pred_check_branch
      %19 = sbr.rel (0) target = $region9
    $region8: #{tpu_custom_call.1} parent=1 // pred_region
      %20 = dma.done [#allocation3], 256
    $region9: #{tpu_custom_call.1} parent=1 // pred_fallthru
      _
    %v21 = vld [vmem:[#allocation2] sm:$0xff]
    %v22 = vld [vmem:[#allocation2 + $0x8] sm:$0xff]
    %v23 = vmul.f32 %v21, 2.3025851
    %v24 = vmul.f32 %v22, 2.3025851
    %v25 = vmul.f32 %v23, 1.442695
    %v26 = vpow.pop %v25
    %v27 = vmul.f32 %v24, 1.442695
    %v28 = vpow.pop %v27
    %29 = vst [vmem:[#allocation5] sm:$0xff] %v26
    %30 = vst [vmem:[#allocation5 + $0x8] sm:$0xff] %v28
    // Predicated region
    $region10: #{tpu_custom_call.1} parent=1 // pred_check
      _
    $region11: #{tpu_custom_call.1} parent=1 // pred_check_branch
      %32 = sbr.rel (0) target = $region13
    $region12: #{tpu_custom_call.1} parent=1 // pred_region
      %s34 = ssub.s32 256, 256
      %35 = vsyncadd [#allocation4], %s34
      %s37 = sshll.u32 [#allocation5], 4
      %s38 = int_to_ptr.vmem [resolvable:$true] %s37
      %40 = dma.vmem_to_hbm [thread:$0]  %s38, 256, %s1, [#allocation4]
    $region13: #{tpu_custom_call.1} parent=1 // pred_fallthru
      _
    // Predicated region
    $region14: #{tpu_custom_call.1} parent=1 // pred_check
      _
    $region15: #{tpu_custom_call.1} parent=1 // pred_check_branch
      %42 = sbr.rel (0) target = $region17
    $region16: #{tpu_custom_call.1} parent=1 // pred_region
      %43 = dma.done [#allocation4], 256
    $region17: #{tpu_custom_call.1} parent=1 // pred_fallthru
      _
    %44 = vsyncpa [#allocation3], 1
    %45 = vsyncpa [#allocation4], 1

</llo_original>
